<compile_context>
chip_gen: v6e
topology: v6e:2x2x1
jax: 0.10.0
libtpu: 0.0.40
codegen_flags: <defaults>
</compile_context>

<pallas_src>
import jax
import jax.numpy as jnp
from jax.experimental import pallas as pl
from jax.experimental.pallas import tpu as pltpu


def _round_up(x, m):
    return (x + m - 1) // m * m


def _mlp_kernel(x_ref,
                w1_ref, b1_ref,
                w2_ref, b2_ref,
                w3_ref, b3_ref,
                w4_ref, b4_ref,
                o_ref, acc_ref):
    k = pl.program_id(1)

    @pl.when(k == 0)
    def _init():
        acc_ref[...] = jnp.zeros_like(acc_ref)

    # fc1 partial product for this K tile (f32 accumulation on the MXU).
    acc_ref[...] += jnp.dot(x_ref[...], w1_ref[...],
                            preferred_element_type=jnp.float32)

    @pl.when(k == pl.num_programs(1) - 1)
    def _finalize():
        cdt = w2_ref.dtype
        # fc1 bias + relu (f32 on the VPU)
        h = jnp.maximum(acc_ref[...] + b1_ref[...], 0.0)
        # fc2 + relu
        h = jnp.dot(h.astype(cdt), w2_ref[...],
                    preferred_element_type=jnp.float32)
        h = jnp.maximum(h + b2_ref[...], 0.0)
        # fc3 + relu
        h = jnp.dot(h.astype(cdt), w3_ref[...],
                    preferred_element_type=jnp.float32)
        h = jnp.maximum(h + b3_ref[...], 0.0)
        # fc4 (no activation)
        h = jnp.dot(h.astype(cdt), w4_ref[...],
                    preferred_element_type=jnp.float32)
        o_ref[...] = (h + b4_ref[...]).astype(o_ref.dtype)


def fully_connected_forward(x_nchw, params, *, weight_dtype=jnp.bfloat16,
                            tb=512, batch_core_parallel=False):
    """x_nchw: (B, 3, n, m). params: dict name -> (W[in,out], b[1,out]).

    weight_dtype: jnp.bfloat16 (perf path, x streamed in bf16, f32 accumulation)
                  or jnp.float32 (exact-semantics verification path).
    tb: requested batch tile (rounded to 8; shrunk adaptively to avoid padding waste).
    batch_core_parallel: on v7x, shard the batch grid axis across both TensorCores.
    """
    compute_dtype = jnp.dtype(weight_dtype)
    B = x_nchw.shape[0]
    # PyTorch x.view(B, -1) flattening order == C-order reshape.
    x_flat = x_nchw.reshape(B, -1).astype(compute_dtype)
    f_in = x_flat.shape[1]

    (w1, b1), (w2, b2), (w3, b3), (w4, b4) = (
        params["fc1"], params["fc2"], params["fc3"], params["fc4"])
    out_dim = w4.shape[1]

    # Lane-aligned padded widths (zero padding is numerically exact).
    h1 = _round_up(w1.shape[1], 128)   # 200 -> 256
    h2 = _round_up(w2.shape[1], 128)   # 200 -> 256
    h3 = _round_up(w3.shape[1], 128)   # 100 -> 128
    o_pad = _round_up(out_dim, 128)    #   5 -> 128

    # --- Batch tiling: pick n_tiles first, then shrink the tile so the last
    # tile is never mostly padding (waste < 8 rows total). ---
    tb_req = max(8, _round_up(tb, 8))
    n_bt = -(-B // tb_req)                      # ceil(B / tb_req)
    tb_eff = _round_up(-(-B // n_bt), 8)        # ceil(B / n_bt) rounded to 8
    b_pad = n_bt * tb_eff

    # --- fc1 K tiling so the x / w1 tiles always fit in VMEM (v7x: 64 MiB) ---
    f_pad = _round_up(f_in, 128)
    wsize = compute_dtype.itemsize
    out_dtype = (compute_dtype if compute_dtype == jnp.dtype(jnp.bfloat16)
                 else jnp.dtype(jnp.float32))
    osize = out_dtype.itemsize
    vmem_budget = 48 * 1024 * 1024
    fixed_bytes = (2 * (h1 * h2 + h2 * h3 + h3 * o_pad) * wsize   # w2..w4 (dbl-buf)
                   + 2 * (h1 + h2 + h3 + o_pad) * 4               # biases (f32)
                   + 2 * tb_eff * o_pad * osize                   # out tile
                   + tb_eff * h1 * 4)                             # f32 accumulator
    per_k_bytes = lambda t: 2 * t * (tb_eff + h1) * wsize         # x + w1 tiles
    tk = f_pad
    while tk > 128 and fixed_bytes + per_k_bytes(tk) > vmem_budget:
        tk = _round_up(tk // 2, 128)
    f_pad = _round_up(f_pad, tk)
    nk = f_pad // tk

    def pad_w(w, rows, cols):
        wv = w.astype(compute_dtype)
        pr, pc = rows - w.shape[0], cols - w.shape[1]
        return jnp.pad(wv, ((0, pr), (0, pc))) if (pr or pc) else wv

    def pad_b(b, cols):
        bv = b.astype(jnp.float32).reshape(1, -1)
        pc = cols - bv.shape[1]
        return jnp.pad(bv, ((0, 0), (0, pc))) if pc else bv

    w1p, b1p = pad_w(w1, f_pad, h1), pad_b(b1, h1)
    w2p, b2p = pad_w(w2, h1, h2),    pad_b(b2, h2)
    w3p, b3p = pad_w(w3, h2, h3),    pad_b(b3, h3)
    w4p, b4p = pad_w(w4, h3, o_pad), pad_b(b4, o_pad)

    # x: pad only if needed (no extra full read+write pass when already aligned).
    pr, pc = b_pad - B, f_pad - f_in
    x_p = jnp.pad(x_flat, ((0, pr), (0, pc))) if (pr or pc) else x_flat

    grid = (n_bt, nk)
    const = lambda i, k: (0, 0)   # resident weights/biases: same block every step

    flops = 2 * b_pad * (f_pad * h1 + h1 * h2 + h2 * h3 + h3 * o_pad)
    w1_bytes = f_pad * h1 * wsize * (n_bt if nk > 1 else 1)
    other_w_bytes = (h1 * h2 + h2 * h3 + h3 * o_pad) * wsize
    bias_bytes = (h1 + h2 + h3 + o_pad) * 4
    bytes_accessed = int(b_pad * f_pad * wsize + w1_bytes + other_w_bytes
                         + bias_bytes + b_pad * o_pad * osize)

    batch_sem = pltpu.CORE_PARALLEL if batch_core_parallel else pltpu.PARALLEL
    vmem_limit = int(min(64 * 1024 * 1024,
                         max(32 * 1024 * 1024,
                             2 * (fixed_bytes + per_k_bytes(tk)))))

    out_padded = pl.pallas_call(
        _mlp_kernel,
        out_shape=jax.ShapeDtypeStruct((b_pad, o_pad), out_dtype),
        grid=grid,
        in_specs=[
            pl.BlockSpec((tb_eff, tk), lambda i, k: (i, k)),   # x: batch x K tiles
            pl.BlockSpec((tk, h1), lambda i, k: (k, 0)),       # w1: K-tiled
            pl.BlockSpec((1, h1), const),
            pl.BlockSpec((h1, h2), const),    pl.BlockSpec((1, h2), const),
            pl.BlockSpec((h2, h3), const),    pl.BlockSpec((1, h3), const),
            pl.BlockSpec((h3, o_pad), const), pl.BlockSpec((1, o_pad), const),
        ],
        out_specs=pl.BlockSpec((tb_eff, o_pad), lambda i, k: (i, 0)),
        scratch_shapes=[pltpu.VMEM((tb_eff, h1), jnp.float32)],
        compiler_params=pltpu.CompilerParams(
            dimension_semantics=(batch_sem, pltpu.ARBITRARY),
            vmem_limit_bytes=vmem_limit),
        cost_estimate=pl.CostEstimate(
            flops=flops, transcendentals=0, bytes_accessed=bytes_accessed),
    )(x_p, w1p, b1p, w2p, b2p, w3p, b3p, w4p, b4p)

    return out_padded[:B, :out_dim].astype(jnp.float32)


def init_params(key, n, m):
    """Mimics nn.Linear default init (uniform +/- 1/sqrt(fan_in)).

    Weights stored as (in_features, out_features) so the kernel does x @ W.
    Biases stored as (1, out_features) so they broadcast over the batch.
    """
    dims = [(n * m * 3, 200), (200, 200), (200, 100), (100, 5)]
    names = ["fc1", "fc2", "fc3", "fc4"]
    params = {}
    for name, (fin, fout) in zip(names, dims):
        key, kw, kb = jax.random.split(key, 3)
        bound = 1.0 / jnp.sqrt(jnp.float32(fin))
        w = jax.random.uniform(kw, (fin, fout), jnp.float32, -bound, bound)
        b = jax.random.uniform(kb, (1, fout), jnp.float32, -bound, bound)
        params[name] = (w, b)
    return params


def reference_forward(x_nchw, params):
    B = x_nchw.shape[0]
    h = x_nchw.reshape(B, -1)
    hp = jax.lax.Precision.HIGHEST
    for name in ["fc1", "fc2", "fc3"]:
        w, b = params[name]
        h = jnp.maximum(jnp.dot(h, w, precision=hp) + b, 0.0)
    w, b = params["fc4"]
    return jnp.dot(h, w, precision=hp) + b


if __name__ == "__main__":
    B, C, n, m = 2, 3, 16, 16
    key = jax.random.PRNGKey(0)
    k_x, k_p = jax.random.split(key)

    x = jax.random.normal(k_x, (B, C, n, m), jnp.float32)
    params = init_params(k_p, n, m)
    ref = reference_forward(x, params)

    # Exact-semantics path (f32 weights + f32 x streaming).
    out_f32 = jax.block_until_ready(
        fully_connected_forward(x, params, weight_dtype=jnp.float32))
    assert out_f32.shape == (B, 5), out_f32.shape
    assert jnp.allclose(out_f32, ref, atol=5e-3, rtol=5e-3), "f32 mismatch vs reference"

    # Performance path: bf16 x / weights on the MXU, f32 accumulation, bf16 writeback.
    out_bf16 = jax.block_until_ready(
        fully_connected_forward(x, params, weight_dtype=jnp.bfloat16))
    assert out_bf16.shape == (B, 5), out_bf16.shape
    assert jnp.allclose(out_bf16, ref, atol=3e-2, rtol=3e-2), "bf16 mismatch vs reference"

    print("KERNEL_OK")
</pallas_src>

<mosaic_0001>
module attributes {stable_mosaic.version = 11 : i64} {
  func.func @_mlp_kernel(%arg0: i32, %arg1: i32, %arg2: memref<8x768xf32, #tpu.memory_space<vmem>>, %arg3: memref<768x256xf32, #tpu.memory_space<vmem>>, %arg4: memref<1x256xf32, #tpu.memory_space<vmem>>, %arg5: memref<256x256xf32, #tpu.memory_space<vmem>>, %arg6: memref<1x256xf32, #tpu.memory_space<vmem>>, %arg7: memref<256x128xf32, #tpu.memory_space<vmem>>, %arg8: memref<1x128xf32, #tpu.memory_space<vmem>>, %arg9: memref<128x128xf32, #tpu.memory_space<vmem>>, %arg10: memref<1x128xf32, #tpu.memory_space<vmem>>, %arg11: memref<8x128xf32, #tpu.memory_space<vmem>>, %arg12: memref<8x256xf32, #tpu.memory_space<vmem>>) attributes {dimension_semantics = [#tpu.dimension_semantics<parallel>, #tpu.dimension_semantics<arbitrary>], iteration_bounds = array<i64: 1, 1>, scalar_prefetch = 0 : i64, scratch_operands = 1 : i64, tpu.core_type = #tpu.core_type<tc>, window_params = [{transform_indices = @transform_0, window_bounds = array<i64: 8, 768>}, {transform_indices = @transform_1, window_bounds = array<i64: 768, 256>}, {pipeline_mode = #tpu.pipeline_mode<synchronous>, transform_indices = @transform_2, window_bounds = array<i64: 1, 256>}, {pipeline_mode = #tpu.pipeline_mode<synchronous>, transform_indices = @transform_3, window_bounds = array<i64: 256, 256>}, {pipeline_mode = #tpu.pipeline_mode<synchronous>, transform_indices = @transform_4, window_bounds = array<i64: 1, 256>}, {pipeline_mode = #tpu.pipeline_mode<synchronous>, transform_indices = @transform_5, window_bounds = array<i64: 256, 128>}, {pipeline_mode = #tpu.pipeline_mode<synchronous>, transform_indices = @transform_6, window_bounds = array<i64: 1, 128>}, {pipeline_mode = #tpu.pipeline_mode<synchronous>, transform_indices = @transform_7, window_bounds = array<i64: 128, 128>}, {pipeline_mode = #tpu.pipeline_mode<synchronous>, transform_indices = @transform_8, window_bounds = array<i64: 1, 128>}, {transform_indices = @transform_9, window_bounds = array<i64: 8, 128>}]} {
    %c0_i32 = arith.constant 0 : i32
    %0 = arith.cmpi eq, %arg1, %c0_i32 : i32
    %1 = arith.extui %0 : i1 to i32
    %c0_i32_0 = arith.constant 0 : i32
    %2 = arith.cmpi ne, %1, %c0_i32_0 : i32
    scf.if %2 {
      %cst_10 = arith.constant 0.000000e+00 : f32
      %12 = vector.broadcast %cst_10 : f32 to vector<8x256xf32>
      %c0_11 = arith.constant 0 : index
      %c0_12 = arith.constant 0 : index
      %13 = vector.load %arg12[%c0_11, %c0_12] : memref<8x256xf32, #tpu.memory_space<vmem>>, vector<8x256xf32>
      tpu.vector_store %arg12[%c0_11, %c0_12], %12 {strides = array<i32>} : memref<8x256xf32, #tpu.memory_space<vmem>>, vector<8x256xf32>,
    } else {
    }
    %c0 = arith.constant 0 : index
    %c0_1 = arith.constant 0 : index
    %3 = vector.load %arg12[%c0, %c0_1] : memref<8x256xf32, #tpu.memory_space<vmem>>, vector<8x256xf32>
    %c0_2 = arith.constant 0 : index
    %c0_3 = arith.constant 0 : index
    %4 = vector.load %arg2[%c0_2, %c0_3] : memref<8x768xf32, #tpu.memory_space<vmem>>, vector<8x768xf32>
    %c0_4 = arith.constant 0 : index
    %c0_5 = arith.constant 0 : index
    %5 = vector.load %arg3[%c0_4, %c0_5] : memref<768x256xf32, #tpu.memory_space<vmem>>, vector<768x256xf32>
    %cst = arith.constant dense<0.000000e+00> : vector<8x256xf32>
    %6 = tpu.matmul %4, %5, %cst {dimension_numbers = #tpu.dot_dimension_numbers<[1], [0], [0], [1], [0, 0, 1, 1], [], []>} : vector<8x768xf32>, vector<768x256xf32>, vector<8x256xf32> -> vector<8x256xf32>
    %7 = arith.addf %3, %6 : vector<8x256xf32>
    %c0_6 = arith.constant 0 : index
    %c0_7 = arith.constant 0 : index
    %8 = vector.load %arg12[%c0_6, %c0_7] : memref<8x256xf32, #tpu.memory_space<vmem>>, vector<8x256xf32>
    tpu.vector_store %arg12[%c0_6, %c0_7], %7 {strides = array<i32>} : memref<8x256xf32, #tpu.memory_space<vmem>>, vector<8x256xf32>,
    %c0_i32_8 = arith.constant 0 : i32
    %9 = arith.cmpi eq, %arg1, %c0_i32_8 : i32
    %10 = arith.extui %9 : i1 to i32
    %c0_i32_9 = arith.constant 0 : i32
    %11 = arith.cmpi ne, %10, %c0_i32_9 : i32
    scf.if %11 {
      %c0_10 = arith.constant 0 : index
      %c0_11 = arith.constant 0 : index
      %12 = vector.load %arg12[%c0_10, %c0_11] : memref<8x256xf32, #tpu.memory_space<vmem>>, vector<8x256xf32>
      %c0_12 = arith.constant 0 : index
      %c0_13 = arith.constant 0 : index
      %13 = vector.load %arg4[%c0_12, %c0_13] : memref<1x256xf32, #tpu.memory_space<vmem>>, vector<1x256xf32>
      %14 = vector.broadcast %13 : vector<1x256xf32> to vector<8x256xf32>
      %15 = arith.addf %12, %14 : vector<8x256xf32>
      %cst_14 = arith.constant 0.000000e+00 : f32
      %16 = vector.broadcast %cst_14 : f32 to vector<8x256xf32>
      %17 = arith.maximumf %15, %16 : vector<8x256xf32>
      %c0_15 = arith.constant 0 : index
      %c0_16 = arith.constant 0 : index
      %18 = vector.load %arg5[%c0_15, %c0_16] : memref<256x256xf32, #tpu.memory_space<vmem>>, vector<256x256xf32>
      %cst_17 = arith.constant dense<0.000000e+00> : vector<8x256xf32>
      %19 = tpu.matmul %17, %18, %cst_17 {dimension_numbers = #tpu.dot_dimension_numbers<[1], [0], [0], [1], [0, 0, 1, 1], [], []>} : vector<8x256xf32>, vector<256x256xf32>, vector<8x256xf32> -> vector<8x256xf32>
      %c0_18 = arith.constant 0 : index
      %c0_19 = arith.constant 0 : index
      %20 = vector.load %arg6[%c0_18, %c0_19] : memref<1x256xf32, #tpu.memory_space<vmem>>, vector<1x256xf32>
      %21 = vector.broadcast %20 : vector<1x256xf32> to vector<8x256xf32>
      %22 = arith.addf %19, %21 : vector<8x256xf32>
      %cst_20 = arith.constant 0.000000e+00 : f32
      %23 = vector.broadcast %cst_20 : f32 to vector<8x256xf32>
      %24 = arith.maximumf %22, %23 : vector<8x256xf32>
      %c0_21 = arith.constant 0 : index
      %c0_22 = arith.constant 0 : index
      %25 = vector.load %arg7[%c0_21, %c0_22] : memref<256x128xf32, #tpu.memory_space<vmem>>, vector<256x128xf32>
      %cst_23 = arith.constant dense<0.000000e+00> : vector<8x128xf32>
      %26 = tpu.matmul %24, %25, %cst_23 {dimension_numbers = #tpu.dot_dimension_numbers<[1], [0], [0], [1], [0, 0, 1, 1], [], []>} : vector<8x256xf32>, vector<256x128xf32>, vector<8x128xf32> -> vector<8x128xf32>
      %c0_24 = arith.constant 0 : index
      %c0_25 = arith.constant 0 : index
      %27 = vector.load %arg8[%c0_24, %c0_25] : memref<1x128xf32, #tpu.memory_space<vmem>>, vector<1x128xf32>
      %28 = vector.broadcast %27 : vector<1x128xf32> to vector<8x128xf32>
      %29 = arith.addf %26, %28 : vector<8x128xf32>
      %cst_26 = arith.constant 0.000000e+00 : f32
      %30 = vector.broadcast %cst_26 : f32 to vector<8x128xf32>
      %31 = arith.maximumf %29, %30 : vector<8x128xf32>
      %c0_27 = arith.constant 0 : index
      %c0_28 = arith.constant 0 : index
      %32 = vector.load %arg9[%c0_27, %c0_28] : memref<128x128xf32, #tpu.memory_space<vmem>>, vector<128x128xf32>
      %cst_29 = arith.constant dense<0.000000e+00> : vector<8x128xf32>
      %33 = tpu.matmul %31, %32, %cst_29 {dimension_numbers = #tpu.dot_dimension_numbers<[1], [0], [0], [1], [0, 0, 1, 1], [], []>} : vector<8x128xf32>, vector<128x128xf32>, vector<8x128xf32> -> vector<8x128xf32>
      %c0_30 = arith.constant 0 : index
      %c0_31 = arith.constant 0 : index
      %34 = vector.load %arg10[%c0_30, %c0_31] : memref<1x128xf32, #tpu.memory_space<vmem>>, vector<1x128xf32>
      %35 = vector.broadcast %34 : vector<1x128xf32> to vector<8x128xf32>
      %36 = arith.addf %33, %35 : vector<8x128xf32>
      %c0_32 = arith.constant 0 : index
      %c0_33 = arith.constant 0 : index
      %37 = vector.load %arg11[%c0_32, %c0_33] : memref<8x128xf32, #tpu.memory_space<vmem>>, vector<8x128xf32>
      tpu.vector_store %arg11[%c0_32, %c0_33], %36 {strides = array<i32>} : memref<8x128xf32, #tpu.memory_space<vmem>>, vector<8x128xf32>,
    } else {
    }
    return
  }
  func.func @transform_0(%arg0: i32, %arg1: i32) -> (i32, i32) {
    %c0_i32 = arith.constant 0 : i32
    return %arg0, %arg1 : i32, i32
  }
  func.func @transform_1(%arg0: i32, %arg1: i32) -> (i32, i32) {
    %c0_i32 = arith.constant 0 : i32
    %c0_i32_0 = arith.constant 0 : i32
    return %arg1, %c0_i32 : i32, i32
  }
  func.func @transform_2(%arg0: i32, %arg1: i32) -> (i32, i32) {
    %c0_i32 = arith.constant 0 : i32
    %c0_i32_0 = arith.constant 0 : i32
    %c0_i32_1 = arith.constant 0 : i32
    return %c0_i32, %c0_i32_0 : i32, i32
  }
  func.func @transform_3(%arg0: i32, %arg1: i32) -> (i32, i32) {
    %c0_i32 = arith.constant 0 : i32
    %c0_i32_0 = arith.constant 0 : i32
    %c0_i32_1 = arith.constant 0 : i32
    return %c0_i32, %c0_i32_0 : i32, i32
  }
  func.func @transform_4(%arg0: i32, %arg1: i32) -> (i32, i32) {
    %c0_i32 = arith.constant 0 : i32
    %c0_i32_0 = arith.constant 0 : i32
    %c0_i32_1 = arith.constant 0 : i32
    return %c0_i32, %c0_i32_0 : i32, i32
  }
  func.func @transform_5(%arg0: i32, %arg1: i32) -> (i32, i32) {
    %c0_i32 = arith.constant 0 : i32
    %c0_i32_0 = arith.constant 0 : i32
    %c0_i32_1 = arith.constant 0 : i32
    return %c0_i32, %c0_i32_0 : i32, i32
  }
  func.func @transform_6(%arg0: i32, %arg1: i32) -> (i32, i32) {
    %c0_i32 = arith.constant 0 : i32
    %c0_i32_0 = arith.constant 0 : i32
    %c0_i32_1 = arith.constant 0 : i32
    return %c0_i32, %c0_i32_0 : i32, i32
  }
  func.func @transform_7(%arg0: i32, %arg1: i32) -> (i32, i32) {
    %c0_i32 = arith.constant 0 : i32
    %c0_i32_0 = arith.constant 0 : i32
    %c0_i32_1 = arith.constant 0 : i32
    return %c0_i32, %c0_i32_0 : i32, i32
  }
  func.func @transform_8(%arg0: i32, %arg1: i32) -> (i32, i32) {
    %c0_i32 = arith.constant 0 : i32
    %c0_i32_0 = arith.constant 0 : i32
    %c0_i32_1 = arith.constant 0 : i32
    return %c0_i32, %c0_i32_0 : i32, i32
  }
  func.func @transform_9(%arg0: i32, %arg1: i32) -> (i32, i32) {
    %c0_i32 = arith.constant 0 : i32
    %c0_i32_0 = arith.constant 0 : i32
    return %arg0, %c0_i32 : i32, i32
  }
}

</mosaic_0001>

<llo_original>
// kernel: tpu_custom_call.1
$region0: #{tpu_custom_call.1}
  #allocation0 [shape = 'u32[]', space=smem, size = 0x4, offset = 0x4, fixed_abs, tag = 'smem constant byte address 0x4 - core index']
  #allocation1 [shape = 'u32[144,128]{1,0:T(1,128)}', space=vmem, size = 0x12000, scoped, tag = 'internal scratch']
  #allocation2 [shape = 'f32[8,256]{1,0:T(8,128)}', space=vmem, size = 0x2000, scoped, tag = 'scratch operand']
  %s0 = inlined_call_operand.hbm [shape: f32[8,768], index: 0, kind: input, shape index: {}]
  %s1 = inlined_call_operand.hbm [shape: f32[768,256], index: 1, kind: input, shape index: {}]
  %s2 = inlined_call_operand.vmem [shape: f32[1,256], index: 2, kind: input, shape index: {}]
  %s3 = inlined_call_operand.hbm [shape: f32[256,256], index: 3, kind: input, shape index: {}]
  %s4 = inlined_call_operand.vmem [shape: f32[1,256], index: 4, kind: input, shape index: {}]
  %s5 = inlined_call_operand.hbm [shape: f32[256,128], index: 5, kind: input, shape index: {}]
  %s6 = inlined_call_operand.vmem [shape: f32[1,128], index: 6, kind: input, shape index: {}]
  %s7 = inlined_call_operand.hbm [shape: f32[128,128], index: 7, kind: input, shape index: {}]
  %s8 = inlined_call_operand.vmem [shape: f32[1,128], index: 8, kind: input, shape index: {}]
  %s9 = inlined_call_operand.hbm [shape: f32[8,128], index: 9, kind: output, shape index: {}]
  %s10 = sld [smem:[#allocation0]]
  $region74: #{tpu_custom_call.1} parent=0
    _
  %s12 = ssub.s32 1, %s10
  %s13 = scalar_select 0, %s12, %s10
  $region1: #{tpu_custom_call.1} parent=0
    #allocation3 [shape = 'u8[24576]{0}', space=vmem, size = 0x6000, scoped, tag = 'input window, operand 0, single buffered']
    #allocation4 [shape = 's32[1]{0}', space=sflag, size = 0x4, scoped, tag = 'scoped memory for tpu_custom_call.1']
    #allocation5 [shape = 's32[1]{0}', space=sflag, size = 0x4, scoped, tag = 'scoped memory for tpu_custom_call.1']
    #allocation6 [shape = 'u8[786432]{0}', space=vmem, size = 0xc0000, scoped, tag = 'input window, operand 1, single buffered']
    #allocation7 [shape = 's32[1]{0}', space=sflag, size = 0x4, scoped, tag = 'scoped memory for tpu_custom_call.1']
    #allocation8 [shape = 'u8[262144]{0}', space=vmem, size = 0x40000, scoped, tag = 'input window, operand 3, single buffered']
    #allocation9 [shape = 'u8[131072]{0}', space=vmem, size = 0x20000, scoped, tag = 'input window, operand 5, single buffered']
    #allocation10 [shape = 's32[1]{0}', space=sflag, size = 0x4, scoped, tag = 'scoped memory for tpu_custom_call.1']
    #allocation11 [shape = 'u8[65536]{0}', space=vmem, size = 0x10000, scoped, tag = 'input window, operand 7, single buffered']
    #allocation12 [shape = 'u8[4096]{0}', space=vmem, size = 0x1000, scoped, tag = 'output window, operand 0, single buffered']
    %14 = vsyncpa [#allocation4], 0
    %15 = vsyncpa [#allocation7], 0
    %16 = vsyncpa [#allocation10], 0
    %17 = vsyncpa [#allocation5], 0
    // Predicated region
    $region2: #{tpu_custom_call.1} parent=1 // pred_check
      _
    $region3: #{tpu_custom_call.1} parent=1 // pred_check_branch
      %19 = sbr.rel (0) target = $region5
    $region4: #{tpu_custom_call.1} parent=1 // pred_region
      %s21 = ssub.s32 768, 768
      %22 = vsyncadd [#allocation4], %s21
      %s24 = sshll.u32 [#allocation3], 4
      %s25 = int_to_ptr.vmem [resolvable:$true] %s24
      %27 = dma.hbm_to_vmem [thread:$0]  %s0, 768, %s25, [#allocation4]
    $region5: #{tpu_custom_call.1} parent=1 // pred_fallthru
      _
    // Predicated region
    $region6: #{tpu_custom_call.1} parent=1 // pred_check
      _
    $region7: #{tpu_custom_call.1} parent=1 // pred_check_branch
      %29 = sbr.rel (0) target = $region9
    $region8: #{tpu_custom_call.1} parent=1 // pred_region
      %s31 = ssub.s32 24576, 24576
      %32 = vsyncadd [#allocation7], %s31
      %s33 = sshll.u32 [#allocation6], 4
      %s34 = int_to_ptr.vmem [resolvable:$true] %s33
      %39 = dma.hbm_to_vmem [thread:$0]  %s1, 24576, %s34, [#allocation7], 256, 256, 16
    $region9: #{tpu_custom_call.1} parent=1 // pred_fallthru
      _
    // Predicated region
    $region10: #{tpu_custom_call.1} parent=1 // pred_check
      _
    $region11: #{tpu_custom_call.1} parent=1 // pred_check_branch
      %41 = sbr.rel (0) target = $region13
    $region12: #{tpu_custom_call.1} parent=1 // pred_region
      _
    $region13: #{tpu_custom_call.1} parent=1 // pred_fallthru
      _
    // Predicated region
    $region14: #{tpu_custom_call.1} parent=1 // pred_check
      _
    $region15: #{tpu_custom_call.1} parent=1 // pred_check_branch
      %43 = sbr.rel (0) target = $region17
    $region16: #{tpu_custom_call.1} parent=1 // pred_region
      %s45 = ssub.s32 8192, 8192
      %46 = vsyncadd [#allocation7], %s45
      %s47 = sshll.u32 [#allocation8], 4
      %s48 = int_to_ptr.vmem [resolvable:$true] %s47
      %53 = dma.hbm_to_vmem [thread:$0]  %s3, 8192, %s48, [#allocation7], 256, 256, 16
    $region17: #{tpu_custom_call.1} parent=1 // pred_fallthru
      _
    // Predicated region
    $region18: #{tpu_custom_call.1} parent=1 // pred_check
      _
    $region19: #{tpu_custom_call.1} parent=1 // pred_check_branch
      %55 = sbr.rel (0) target = $region21
    $region20: #{tpu_custom_call.1} parent=1 // pred_region
      _
    $region21: #{tpu_custom_call.1} parent=1 // pred_fallthru
      _
    // Predicated region
    $region22: #{tpu_custom_call.1} parent=1 // pred_check
      _
    $region23: #{tpu_custom_call.1} parent=1 // pred_check_branch
      %57 = sbr.rel (0) target = $region25
    $region24: #{tpu_custom_call.1} parent=1 // pred_region
      %s59 = ssub.s32 4096, 4096
      %60 = vsyncadd [#allocation10], %s59
      %s61 = sshll.u32 [#allocation9], 4
      %s62 = int_to_ptr.vmem [resolvable:$true] %s61
      %67 = dma.hbm_to_vmem [thread:$0]  %s5, 4096, %s62, [#allocation10], 128, 128, 8
    $region25: #{tpu_custom_call.1} parent=1 // pred_fallthru
      _
    // Predicated region
    $region26: #{tpu_custom_call.1} parent=1 // pred_check
      _
    $region27: #{tpu_custom_call.1} parent=1 // pred_check_branch
      %69 = sbr.rel (0) target = $region29
    $region28: #{tpu_custom_call.1} parent=1 // pred_region
      _
    $region29: #{tpu_custom_call.1} parent=1 // pred_fallthru
      _
    // Predicated region
    $region30: #{tpu_custom_call.1} parent=1 // pred_check
      _
    $region31: #{tpu_custom_call.1} parent=1 // pred_check_branch
      %71 = sbr.rel (0) target = $region33
    $region32: #{tpu_custom_call.1} parent=1 // pred_region
      %s73 = ssub.s32 2048, 2048
      %74 = vsyncadd [#allocation10], %s73
      %s75 = sshll.u32 [#allocation11], 4
      %s76 = int_to_ptr.vmem [resolvable:$true] %s75
      %81 = dma.hbm_to_vmem [thread:$0]  %s7, 2048, %s76, [#allocation10], 128, 128, 8
    $region33: #{tpu_custom_call.1} parent=1 // pred_fallthru
      _
    // Predicated region
    $region34: #{tpu_custom_call.1} parent=1 // pred_check
      _
    $region35: #{tpu_custom_call.1} parent=1 // pred_check_branch
      %83 = sbr.rel (0) target = $region37
    $region36: #{tpu_custom_call.1} parent=1 // pred_region
      _
    $region37: #{tpu_custom_call.1} parent=1 // pred_fallthru
      _
    // Predicated region
    $region38: #{tpu_custom_call.1} parent=1 // pred_check
      _
    $region39: #{tpu_custom_call.1} parent=1 // pred_check_branch
      %85 = sbr.rel (0) target = $region41
    $region40: #{tpu_custom_call.1} parent=1 // pred_region
      %86 = dma.done [#allocation4], 768
    $region41: #{tpu_custom_call.1} parent=1 // pred_fallthru
      _
    // Predicated region
    $region42: #{tpu_custom_call.1} parent=1 // pred_check
      _
    $region43: #{tpu_custom_call.1} parent=1 // pred_check_branch
      %88 = sbr.rel (0) target = $region45
    $region44: #{tpu_custom_call.1} parent=1 // pred_region
      %89 = dma.done [#allocation7], 24576
    $region45: #{tpu_custom_call.1} parent=1 // pred_fallthru
      _
    // Predicated region
    $region46: #{tpu_custom_call.1} parent=1 // pred_check
      _
    $region47: #{tpu_custom_call.1} parent=1 // pred_check_branch
      %91 = sbr.rel (0) target = $region49
    $region48: #{tpu_custom_call.1} parent=1 // pred_region
      %92 = dma.done [#allocation7], 8192
    $region49: #{tpu_custom_call.1} parent=1 // pred_fallthru
      _
    // Predicated region
    $region50: #{tpu_custom_call.1} parent=1 // pred_check
      _
    $region51: #{tpu_custom_call.1} parent=1 // pred_check_branch
      %94 = sbr.rel (0) target = $region53
    $region52: #{tpu_custom_call.1} parent=1 // pred_region
      %95 = dma.done [#allocation10], 4096
    $region53: #{tpu_custom_call.1} parent=1 // pred_fallthru
      _
    // Predicated region
    $region54: #{tpu_custom_call.1} parent=1 // pred_check
      _
    $region55: #{tpu_custom_call.1} parent=1 // pred_check_branch
      %97 = sbr.rel (0) target = $region57
    $region56: #{tpu_custom_call.1} parent=1 // pred_region
      %98 = dma.done [#allocation10], 2048
    $region57: #{tpu_custom_call.1} parent=1 // pred_fallthru
      _
    %p99 = scmp.eq.s32.totalorder 0, 0
    // Predicated region
    $region58: #{tpu_custom_call.1} parent=1 // pred_check
      %p100 = pneg %p99
    $region59: #{tpu_custom_call.1} parent=1 // pred_check_branch
      %102 = sbr.rel (%p100) target = $region61
    $region60: #{tpu_custom_call.1} parent=1 // pred_region
      %103 = vst [vmem:[#allocation2] sm:$0xff] 0.0
      %104 = vst [vmem:[#allocation2 + $0x8] sm:$0xff] 0.0
    $region61: #{tpu_custom_call.1} parent=1 // pred_fallthru
      _
    %v105 = vld [vmem:[#allocation2] sm:$0xff]
    %v106 = vld [vmem:[#allocation2 + $0x8] sm:$0xff]
    %v107 = vld [vmem:[#allocation3] sm:$0xff]
    %v108 = vld [vmem:[#allocation3 + $0x8] sm:$0xff]
    %v109 = vld [vmem:[#allocation3 + $0x10] sm:$0xff]
    %v110 = vld [vmem:[#allocation3 + $0x18] sm:$0xff]
    %v111 = vld [vmem:[#allocation3 + $0x20] sm:$0xff]
    %v112 = vld [vmem:[#allocation3 + $0x28] sm:$0xff]
    %v113 = vld [vmem:[#allocation6] sm:$0xff]
    %v114 = vld [vmem:[#allocation6 + $0x8] sm:$0xff]
    %v115 = vld [vmem:[#allocation6 + $0x10] sm:$0xff]
    %v116 = vld [vmem:[#allocation6 + $0x18] sm:$0xff]
    %v117 = vld [vmem:[#allocation6 + $0x20] sm:$0xff]
    %v118 = vld [vmem:[#allocation6 + $0x28] sm:$0xff]
    %v119 = vld [vmem:[#allocation6 + $0x30] sm:$0xff]
    %v120 = vld [vmem:[#allocation6 + $0x38] sm:$0xff]
    %v121 = vld [vmem:[#allocation6 + $0x40] sm:$0xff]
    %v122 = vld [vmem:[#allocation6 + $0x48] sm:$0xff]
    %v123 = vld [vmem:[#allocation6 + $0x50] sm:$0xff]
    %v124 = vld [vmem:[#allocation6 + $0x58] sm:$0xff]
    %v125 = vld [vmem:[#allocation6 + $0x60] sm:$0xff]
    %v126 = vld [vmem:[#allocation6 + $0x68] sm:$0xff]
    %v127 = vld [vmem:[#allocation6 + $0x70] sm:$0xff]
    %v128 = vld [vmem:[#allocation6 + $0x78] sm:$0xff]
    %v129 = vld [vmem:[#allocation6 + $0x80] sm:$0xff]
    %v130 = vld [vmem:[#allocation6 + $0x88] sm:$0xff]
    %v131 = vld [vmem:[#allocation6 + $0x90] sm:$0xff]
    %v132 = vld [vmem:[#allocation6 + $0x98] sm:$0xff]
    %v133 = vld [vmem:[#allocation6 + $0xa0] sm:$0xff]
    %v134 = vld [vmem:[#allocation6 + $0xa8] sm:$0xff]
    %v135 = vld [vmem:[#allocation6 + $0xb0] sm:$0xff]
    %v136 = vld [vmem:[#allocation6 + $0xb8] sm:$0xff]
    %v137 = vld [vmem:[#allocation6 + $0xc0] sm:$0xff]
    %v138 = vld [vmem:[#allocation6 + $0xc8] sm:$0xff]
    %v139 = vld [vmem:[#allocation6 + $0xd0] sm:$0xff]
    %v140 = vld [vmem:[#allocation6 + $0xd8] sm:$0xff]
    %v141 = vld [vmem:[#allocation6 + $0xe0] sm:$0xff]
    %v142 = vld [vmem:[#allocation6 + $0xe8] sm:$0xff]
    %v143 = vld [vmem:[#allocation6 + $0xf0] sm:$0xff]
    %v144 = vld [vmem:[#allocation6 + $0xf8] sm:$0xff]
    %v145 = vld [vmem:[#allocation6 + $0x100] sm:$0xff]
    %v146 = vld [vmem:[#allocation6 + $0x108] sm:$0xff]
    %v147 = vld [vmem:[#allocation6 + $0x110] sm:$0xff]
    %v148 = vld [vmem:[#allocation6 + $0x118] sm:$0xff]
    %v149 = vld [vmem:[#allocation6 + $0x120] sm:$0xff]
    %v150 = vld [vmem:[#allocation6 + $0x128] sm:$0xff]
    %v151 = vld [vmem:[#allocation6 + $0x130] sm:$0xff]
    %v152 = vld [vmem:[#allocation6 + $0x138] sm:$0xff]
    %v153 = vld [vmem:[#allocation6 + $0x140] sm:$0xff]
    %v154 = vld [vmem:[#allocation6 + $0x148] sm:$0xff]
    %v155 = vld [vmem:[#allocation6 + $0x150] sm:$0xff]
    %v156 = vld [vmem:[#allocation6 + $0x158] sm:$0xff]
    %v157 = vld [vmem:[#allocation6 + $0x160] sm:$0xff]
    %v158 = vld [vmem:[#allocation6 + $0x168] sm:$0xff]
    %v159 = vld [vmem:[#allocation6 + $0x170] sm:$0xff]
    %v160 = vld [vmem:[#allocation6 + $0x178] sm:$0xff]
    %v161 = vld [vmem:[#allocation6 + $0x180] sm:$0xff]
    %v162 = vld [vmem:[#allocation6 + $0x188] sm:$0xff]
    %v163 = vld [vmem:[#allocation6 + $0x190] sm:$0xff]
    %v164 = vld [vmem:[#allocation6 + $0x198] sm:$0xff]
    %v165 = vld [vmem:[#allocation6 + $0x1a0] sm:$0xff]
    %v166 = vld [vmem:[#allocation6 + $0x1a8] sm:$0xff]
    %v167 = vld [vmem:[#allocation6 + $0x1b0] sm:$0xff]
    %v168 = vld [vmem:[#allocation6 + $0x1b8] sm:$0xff]
    %v169 = vld [vmem:[#allocation6 + $0x1c0] sm:$0xff]
    %v170 = vld [vmem:[#allocation6 + $0x1c8] sm:$0xff]
    %v171 = vld [vmem:[#allocation6 + $0x1d0] sm:$0xff]
    %v172 = vld [vmem:[#allocation6 + $0x1d8] sm:$0xff]
    %v173 = vld [vmem:[#allocation6 + $0x1e0] sm:$0xff]
    %v174 = vld [vmem:[#allocation6 + $0x1e8] sm:$0xff]
    %v175 = vld [vmem:[#allocation6 + $0x1f0] sm:$0xff]
    %v176 = vld [vmem:[#allocation6 + $0x1f8] sm:$0xff]
    %v177 = vld [vmem:[#allocation6 + $0x200] sm:$0xff]
    %v178 = vld [vmem:[#allocation6 + $0x208] sm:$0xff]
    %v179 = vld [vmem:[#allocation6 + $0x210] sm:$0xff]
    %v180 = vld [vmem:[#allocation6 + $0x218] sm:$0xff]
    %v181 = vld [vmem:[#allocation6 + $0x220] sm:$0xff]
    %v182 = vld [vmem:[#allocation6 + $0x228] sm:$0xff]
    %v183 = vld [vmem:[#allocation6 + $0x230] sm:$0xff]
    %v184 = vld [vmem:[#allocation6 + $0x238] sm:$0xff]
    %v185 = vld [vmem:[#allocation6 + $0x240] sm:$0xff]
    %v186 = vld [vmem:[#allocation6 + $0x248] sm:$0xff]
    %v187 = vld [vmem:[#allocation6 + $0x250] sm:$0xff]
    %v188 = vld [vmem:[#allocation6 + $0x258] sm:$0xff]
    %v189 = vld [vmem:[#allocation6 + $0x260] sm:$0xff]
    %v190 = vld [vmem:[#allocation6 + $0x268] sm:$0xff]
    %v191 = vld [vmem:[#allocation6 + $0x270] sm:$0xff]
    %v192 = vld [vmem:[#allocation6 + $0x278] sm:$0xff]
    %v193 = vld [vmem:[#allocation6 + $0x280] sm:$0xff]
    %v194 = vld [vmem:[#allocation6 + $0x288] sm:$0xff]
    %v195 = vld [vmem:[#allocation6 + $0x290] sm:$0xff]
    %v196 = vld [vmem:[#allocation6 + $0x298] sm:$0xff]
    %v197 = vld [vmem:[#allocation6 + $0x2a0] sm:$0xff]
    %v198 = vld [vmem:[#allocation6 + $0x2a8] sm:$0xff]
    %v199 = vld [vmem:[#allocation6 + $0x2b0] sm:$0xff]
    %v200 = vld [vmem:[#allocation6 + $0x2b8] sm:$0xff]
    %v201 = vld [vmem:[#allocation6 + $0x2c0] sm:$0xff]
    %v202 = vld [vmem:[#allocation6 + $0x2c8] sm:$0xff]
    %v203 = vld [vmem:[#allocation6 + $0x2d0] sm:$0xff]
    %v204 = vld [vmem:[#allocation6 + $0x2d8] sm:$0xff]
    %v205 = vld [vmem:[#allocation6 + $0x2e0] sm:$0xff]
    %v206 = vld [vmem:[#allocation6 + $0x2e8] sm:$0xff]
    %v207 = vld [vmem:[#allocation6 + $0x2f0] sm:$0xff]
    %v208 = vld [vmem:[#allocation6 + $0x2f8] sm:$0xff]
    %v209 = vld [vmem:[#allocation6 + $0x300] sm:$0xff]
    %v210 = vld [vmem:[#allocation6 + $0x308] sm:$0xff]
    %v211 = vld [vmem:[#allocation6 + $0x310] sm:$0xff]
    %v212 = vld [vmem:[#allocation6 + $0x318] sm:$0xff]
    %v213 = vld [vmem:[#allocation6 + $0x320] sm:$0xff]
    %v214 = vld [vmem:[#allocation6 + $0x328] sm:$0xff]
    %v215 = vld [vmem:[#allocation6 + $0x330] sm:$0xff]
    %v216 = vld [vmem:[#allocation6 + $0x338] sm:$0xff]
    %v217 = vld [vmem:[#allocation6 + $0x340] sm:$0xff]
    %v218 = vld [vmem:[#allocation6 + $0x348] sm:$0xff]
    %v219 = vld [vmem:[#allocation6 + $0x350] sm:$0xff]
    %v220 = vld [vmem:[#allocation6 + $0x358] sm:$0xff]
    %v221 = vld [vmem:[#allocation6 + $0x360] sm:$0xff]
    %v222 = vld [vmem:[#allocation6 + $0x368] sm:$0xff]
    %v223 = vld [vmem:[#allocation6 + $0x370] sm:$0xff]
    %v224 = vld [vmem:[#allocation6 + $0x378] sm:$0xff]
    %v225 = vld [vmem:[#allocation6 + $0x380] sm:$0xff]
    %v226 = vld [vmem:[#allocation6 + $0x388] sm:$0xff]
    %v227 = vld [vmem:[#allocation6 + $0x390] sm:$0xff]
    %v228 = vld [vmem:[#allocation6 + $0x398] sm:$0xff]
    %v229 = vld [vmem:[#allocation6 + $0x3a0] sm:$0xff]
    %v230 = vld [vmem:[#allocation6 + $0x3a8] sm:$0xff]
    %v231 = vld [vmem:[#allocation6 + $0x3b0] sm:$0xff]
    %v232 = vld [vmem:[#allocation6 + $0x3b8] sm:$0xff]
    %v233 = vld [vmem:[#allocation6 + $0x3c0] sm:$0xff]
    %v234 = vld [vmem:[#allocation6 + $0x3c8] sm:$0xff]
    %v235 = vld [vmem:[#allocation6 + $0x3d0] sm:$0xff]
    %v236 = vld [vmem:[#allocation6 + $0x3d8] sm:$0xff]
    %v237 = vld [vmem:[#allocation6 + $0x3e0] sm:$0xff]
    %v238 = vld [vmem:[#allocation6 + $0x3e8] sm:$0xff]
    %v239 = vld [vmem:[#allocation6 + $0x3f0] sm:$0xff]
    %v240 = vld [vmem:[#allocation6 + $0x3f8] sm:$0xff]
    %v241 = vld [vmem:[#allocation6 + $0x400] sm:$0xff]
    %v242 = vld [vmem:[#allocation6 + $0x408] sm:$0xff]
    %v243 = vld [vmem:[#allocation6 + $0x410] sm:$0xff]
    %v244 = vld [vmem:[#allocation6 + $0x418] sm:$0xff]
    %v245 = vld [vmem:[#allocation6 + $0x420] sm:$0xff]
    %v246 = vld [vmem:[#allocation6 + $0x428] sm:$0xff]
    %v247 = vld [vmem:[#allocation6 + $0x430] sm:$0xff]
    %v248 = vld [vmem:[#allocation6 + $0x438] sm:$0xff]
    %v249 = vld [vmem:[#allocation6 + $0x440] sm:$0xff]
    %v250 = vld [vmem:[#allocation6 + $0x448] sm:$0xff]
    %v251 = vld [vmem:[#allocation6 + $0x450] sm:$0xff]
    %v252 = vld [vmem:[#allocation6 + $0x458] sm:$0xff]
    %v253 = vld [vmem:[#allocation6 + $0x460] sm:$0xff]
    %v254 = vld [vmem:[#allocation6 + $0x468] sm:$0xff]
    %v255 = vld [vmem:[#allocation6 + $0x470] sm:$0xff]
    %v256 = vld [vmem:[#allocation6 + $0x478] sm:$0xff]
    %v257 = vld [vmem:[#allocation6 + $0x480] sm:$0xff]
    %v258 = vld [vmem:[#allocation6 + $0x488] sm:$0xff]
    %v259 = vld [vmem:[#allocation6 + $0x490] sm:$0xff]
    %v260 = vld [vmem:[#allocation6 + $0x498] sm:$0xff]
    %v261 = vld [vmem:[#allocation6 + $0x4a0] sm:$0xff]
    %v262 = vld [vmem:[#allocation6 + $0x4a8] sm:$0xff]
    %v263 = vld [vmem:[#allocation6 + $0x4b0] sm:$0xff]
    %v264 = vld [vmem:[#allocation6 + $0x4b8] sm:$0xff]
    %v265 = vld [vmem:[#allocation6 + $0x4c0] sm:$0xff]
    %v266 = vld [vmem:[#allocation6 + $0x4c8] sm:$0xff]
    %v267 = vld [vmem:[#allocation6 + $0x4d0] sm:$0xff]
    %v268 = vld [vmem:[#allocation6 + $0x4d8] sm:$0xff]
    %v269 = vld [vmem:[#allocation6 + $0x4e0] sm:$0xff]
    %v270 = vld [vmem:[#allocation6 + $0x4e8] sm:$0xff]
    %v271 = vld [vmem:[#allocation6 + $0x4f0] sm:$0xff]
    %v272 = vld [vmem:[#allocation6 + $0x4f8] sm:$0xff]
    %v273 = vld [vmem:[#allocation6 + $0x500] sm:$0xff]
    %v274 = vld [vmem:[#allocation6 + $0x508] sm:$0xff]
    %v275 = vld [vmem:[#allocation6 + $0x510] sm:$0xff]
    %v276 = vld [vmem:[#allocation6 + $0x518] sm:$0xff]
    %v277 = vld [vmem:[#allocation6 + $0x520] sm:$0xff]
    %v278 = vld [vmem:[#allocation6 + $0x528] sm:$0xff]
    %v279 = vld [vmem:[#allocation6 + $0x530] sm:$0xff]
    %v280 = vld [vmem:[#allocation6 + $0x538] sm:$0xff]
    %v281 = vld [vmem:[#allocation6 + $0x540] sm:$0xff]
    %v282 = vld [vmem:[#allocation6 + $0x548] sm:$0xff]
    %v283 = vld [vmem:[#allocation6 + $0x550] sm:$0xff]
    %v284 = vld [vmem:[#allocation6 + $0x558] sm:$0xff]
    %v285 = vld [vmem:[#allocation6 + $0x560] sm:$0xff]
    %v286 = vld [vmem:[#allocation6 + $0x568] sm:$0xff]
    %v287 = vld [vmem:[#allocation6 + $0x570] sm:$0xff]
    %v288 = vld [vmem:[#allocation6 + $0x578] sm:$0xff]
    %v289 = vld [vmem:[#allocation6 + $0x580] sm:$0xff]
    %v290 = vld [vmem:[#allocation6 + $0x588] sm:$0xff]
    %v291 = vld [vmem:[#allocation6 + $0x590] sm:$0xff]
    %v292 = vld [vmem:[#allocation6 + $0x598] sm:$0xff]
    %v293 = vld [vmem:[#allocation6 + $0x5a0] sm:$0xff]
    %v294 = vld [vmem:[#allocation6 + $0x5a8] sm:$0xff]
    %v295 = vld [vmem:[#allocation6 + $0x5b0] sm:$0xff]
    %v296 = vld [vmem:[#allocation6 + $0x5b8] sm:$0xff]
    %v297 = vld [vmem:[#allocation6 + $0x5c0] sm:$0xff]
    %v298 = vld [vmem:[#allocation6 + $0x5c8] sm:$0xff]
    %v299 = vld [vmem:[#allocation6 + $0x5d0] sm:$0xff]
    %v300 = vld [vmem:[#allocation6 + $0x5d8] sm:$0xff]
    %v301 = vld [vmem:[#allocation6 + $0x5e0] sm:$0xff]
    %v302 = vld [vmem:[#allocation6 + $0x5e8] sm:$0xff]
    %v303 = vld [vmem:[#allocation6 + $0x5f0] sm:$0xff]
    %v304 = vld [vmem:[#allocation6 + $0x5f8] sm:$0xff]
    %305 = vmatprep.subr.mxu0 %v144
    %306 = vmatpush1.msra.mxu0 %v143
    %307 = vmatprep.subr.mxu0 %v142
    %308 = vmatpush1.msra.mxu0 %v141
    %309 = vmatprep.subr.mxu0 %v140
    %310 = vmatpush1.msra.mxu0 %v139
    %311 = vmatprep.subr.mxu0 %v138
    %312 = vmatpush1.msra.mxu0 %v137
    %313 = vmatprep.subr.mxu0 %v136
    %314 = vmatpush1.msra.mxu0 %v135
    %315 = vmatprep.subr.mxu0 %v134
    %316 = vmatpush1.msra.mxu0 %v133
    %317 = vmatprep.subr.mxu0 %v132
    %318 = vmatpush1.msra.mxu0 %v131
    %319 = vmatprep.subr.mxu0 %v130
    %320 = vmatpush1.msra.mxu0 %v129
    %321 = vmatprep.subr.mxu0 %v128
    %322 = vmatpush1.msra.mxu0 %v127
    %323 = vmatprep.subr.mxu0 %v126
    %324 = vmatpush1.msra.mxu0 %v125
    %325 = vmatprep.subr.mxu0 %v124
    %326 = vmatpush1.msra.mxu0 %v123
    %327 = vmatprep.subr.mxu0 %v122
    %328 = vmatpush1.msra.mxu0 %v121
    %329 = vmatprep.subr.mxu0 %v120
    %330 = vmatpush1.msra.mxu0 %v119
    %331 = vmatprep.subr.mxu0 %v118
    %332 = vmatpush1.msra.mxu0 %v117
    %333 = vmatprep.subr.mxu0 %v116
    %334 = vmatpush1.msra.mxu0 %v115
    %335 = vmatprep.subr.mxu0 %v114
    %336 = vmatpush1.msra.mxu0 %v113
    %337 = vmatprep.subr.mxu0 %v176
    %338 = vmatpush2.msra.mxu0 %v175
    %339 = vmatprep.subr.mxu0 %v174
    %340 = vmatpush2.msra.mxu0 %v173
    %341 = vmatprep.subr.mxu0 %v172
    %342 = vmatpush2.msra.mxu0 %v171
    %343 = vmatprep.subr.mxu0 %v170
    %344 = vmatpush2.msra.mxu0 %v169
    %345 = vmatprep.subr.mxu0 %v168
    %346 = vmatpush2.msra.mxu0 %v167
    %347 = vmatprep.subr.mxu0 %v166
    %348 = vmatpush2.msra.mxu0 %v165
    %349 = vmatprep.subr.mxu0 %v164
    %350 = vmatpush2.msra.mxu0 %v163
    %351 = vmatprep.subr.mxu0 %v162
    %352 = vmatpush2.msra.mxu0 %v161
    %353 = vmatprep.subr.mxu0 %v160
    %354 = vmatpush2.msra.mxu0 %v159
    %355 = vmatprep.subr.mxu0 %v158
    %356 = vmatpush2.msra.mxu0 %v157
    %357 = vmatprep.subr.mxu0 %v156
    %358 = vmatpush2.msra.mxu0 %v155
    %359 = vmatprep.subr.mxu0 %v154
    %360 = vmatpush2.msra.mxu0 %v153
    %361 = vmatprep.subr.mxu0 %v152
    %362 = vmatpush2.msra.mxu0 %v151
    %363 = vmatprep.subr.mxu0 %v150
    %364 = vmatpush2.msra.mxu0 %v149
    %365 = vmatprep.subr.mxu0 %v148
    %366 = vmatpush2.msra.mxu0 %v147
    %367 = vmatprep.subr.mxu0 %v146
    %368 = vmatpush2.msra.mxu0 %v145
    %369 = vmatprep.mubr.f32.mxu0 %v108
    %370 = vmatmul.mubr.f32.gmra.mxu0 %v107
    %v371 = vpop.f32.mrf.mxu0
    %v372 = vadd.f32 0.0, %v371
    %v373 = vpop.f32.mrf.mxu0
    %v374 = vadd.f32 0.0, %v373
    %375 = vdwg.mxu0
    %376 = vmatprep.subr.mxu0 %v208
    %377 = vmatpush1.msra.mxu0 %v207
    %378 = vmatprep.subr.mxu0 %v206
    %379 = vmatpush1.msra.mxu0 %v205
    %380 = vmatprep.subr.mxu0 %v204
    %381 = vmatpush1.msra.mxu0 %v203
    %382 = vmatprep.subr.mxu0 %v202
    %383 = vmatpush1.msra.mxu0 %v201
    %384 = vmatprep.subr.mxu0 %v200
    %385 = vmatpush1.msra.mxu0 %v199
    %386 = vmatprep.subr.mxu0 %v198
    %387 = vmatpush1.msra.mxu0 %v197
    %388 = vmatprep.subr.mxu0 %v196
    %389 = vmatpush1.msra.mxu0 %v195
    %390 = vmatprep.subr.mxu0 %v194
    %391 = vmatpush1.msra.mxu0 %v193
    %392 = vmatprep.subr.mxu0 %v192
    %393 = vmatpush1.msra.mxu0 %v191
    %394 = vmatprep.subr.mxu0 %v190
    %395 = vmatpush1.msra.mxu0 %v189
    %396 = vmatprep.subr.mxu0 %v188
    %397 = vmatpush1.msra.mxu0 %v187
    %398 = vmatprep.subr.mxu0 %v186
    %399 = vmatpush1.msra.mxu0 %v185
    %400 = vmatprep.subr.mxu0 %v184
    %401 = vmatpush1.msra.mxu0 %v183
    %402 = vmatprep.subr.mxu0 %v182
    %403 = vmatpush1.msra.mxu0 %v181
    %404 = vmatprep.subr.mxu0 %v180
    %405 = vmatpush1.msra.mxu0 %v179
    %406 = vmatprep.subr.mxu0 %v178
    %407 = vmatpush1.msra.mxu0 %v177
    %408 = vmatprep.subr.mxu0 %v240
    %409 = vmatpush2.msra.mxu0 %v239
    %410 = vmatprep.subr.mxu0 %v238
    %411 = vmatpush2.msra.mxu0 %v237
    %412 = vmatprep.subr.mxu0 %v236
    %413 = vmatpush2.msra.mxu0 %v235
    %414 = vmatprep.subr.mxu0 %v234
    %415 = vmatpush2.msra.mxu0 %v233
    %416 = vmatprep.subr.mxu0 %v232
    %417 = vmatpush2.msra.mxu0 %v231
    %418 = vmatprep.subr.mxu0 %v230
    %419 = vmatpush2.msra.mxu0 %v229
    %420 = vmatprep.subr.mxu0 %v228
    %421 = vmatpush2.msra.mxu0 %v227
    %422 = vmatprep.subr.mxu0 %v226
    %423 = vmatpush2.msra.mxu0 %v225
    %424 = vmatprep.subr.mxu0 %v224
    %425 = vmatpush2.msra.mxu0 %v223
    %426 = vmatprep.subr.mxu0 %v222
    %427 = vmatpush2.msra.mxu0 %v221
    %428 = vmatprep.subr.mxu0 %v220
    %429 = vmatpush2.msra.mxu0 %v219
    %430 = vmatprep.subr.mxu0 %v218
    %431 = vmatpush2.msra.mxu0 %v217
    %432 = vmatprep.subr.mxu0 %v216
    %433 = vmatpush2.msra.mxu0 %v215
    %434 = vmatprep.subr.mxu0 %v214
    %435 = vmatpush2.msra.mxu0 %v213
    %436 = vmatprep.subr.mxu0 %v212
    %437 = vmatpush2.msra.mxu0 %v211
    %438 = vmatprep.subr.mxu0 %v210
    %439 = vmatpush2.msra.mxu0 %v209
    %440 = vmatprep.mubr.f32.mxu0 %v110
    %441 = vmatmul.mubr.f32.gmra.mxu0 %v109
    %v442 = vpop.f32.mrf.mxu0
    %v443 = vadd.f32 %v372, %v442
    %v444 = vpop.f32.mrf.mxu0
    %v445 = vadd.f32 %v374, %v444
    %446 = vdwg.mxu0
    %447 = vmatprep.subr.mxu0 %v272
    %448 = vmatpush1.msra.mxu0 %v271
    %449 = vmatprep.subr.mxu0 %v270
    %450 = vmatpush1.msra.mxu0 %v269
    %451 = vmatprep.subr.mxu0 %v268
    %452 = vmatpush1.msra.mxu0 %v267
    %453 = vmatprep.subr.mxu0 %v266
    %454 = vmatpush1.msra.mxu0 %v265
    %455 = vmatprep.subr.mxu0 %v264
    %456 = vmatpush1.msra.mxu0 %v263
    %457 = vmatprep.subr.mxu0 %v262
    %458 = vmatpush1.msra.mxu0 %v261
    %459 = vmatprep.subr.mxu0 %v260
    %460 = vmatpush1.msra.mxu0 %v259
    %461 = vmatprep.subr.mxu0 %v258
    %462 = vmatpush1.msra.mxu0 %v257
    %463 = vmatprep.subr.mxu0 %v256
    %464 = vmatpush1.msra.mxu0 %v255
    %465 = vmatprep.subr.mxu0 %v254
    %466 = vmatpush1.msra.mxu0 %v253
    %467 = vmatprep.subr.mxu0 %v252
    %468 = vmatpush1.msra.mxu0 %v251
    %469 = vmatprep.subr.mxu0 %v250
    %470 = vmatpush1.msra.mxu0 %v249
    %471 = vmatprep.subr.mxu0 %v248
    %472 = vmatpush1.msra.mxu0 %v247
    %473 = vmatprep.subr.mxu0 %v246
    %474 = vmatpush1.msra.mxu0 %v245
    %475 = vmatprep.subr.mxu0 %v244
    %476 = vmatpush1.msra.mxu0 %v243
    %477 = vmatprep.subr.mxu0 %v242
    %478 = vmatpush1.msra.mxu0 %v241
    %479 = vmatprep.subr.mxu0 %v304
    %480 = vmatpush2.msra.mxu0 %v303
    %481 = vmatprep.subr.mxu0 %v302
    %482 = vmatpush2.msra.mxu0 %v301
    %483 = vmatprep.subr.mxu0 %v300
    %484 = vmatpush2.msra.mxu0 %v299
    %485 = vmatprep.subr.mxu0 %v298
    %486 = vmatpush2.msra.mxu0 %v297
    %487 = vmatprep.subr.mxu0 %v296
    %488 = vmatpush2.msra.mxu0 %v295
    %489 = vmatprep.subr.mxu0 %v294
    %490 = vmatpush2.msra.mxu0 %v293
    %491 = vmatprep.subr.mxu0 %v292
    %492 = vmatpush2.msra.mxu0 %v291
    %493 = vmatprep.subr.mxu0 %v290
    %494 = vmatpush2.msra.mxu0 %v289
    %495 = vmatprep.subr.mxu0 %v288
    %496 = vmatpush2.msra.mxu0 %v287
    %497 = vmatprep.subr.mxu0 %v286
    %498 = vmatpush2.msra.mxu0 %v285
    %499 = vmatprep.subr.mxu0 %v284
    %500 = vmatpush2.msra.mxu0 %v283
    %501 = vmatprep.subr.mxu0 %v282
    %502 = vmatpush2.msra.mxu0 %v281
    %503 = vmatprep.subr.mxu0 %v280
    %504 = vmatpush2.msra.mxu0 %v279
    %505 = vmatprep.subr.mxu0 %v278
    %506 = vmatpush2.msra.mxu0 %v277
    %507 = vmatprep.subr.mxu0 %v276
    %508 = vmatpush2.msra.mxu0 %v275
    %509 = vmatprep.subr.mxu0 %v274
    %510 = vmatpush2.msra.mxu0 %v273
    %511 = vmatprep.mubr.f32.mxu0 %v112
    %512 = vmatmul.mubr.f32.gmra.mxu0 %v111
    %v513 = vpop.f32.mrf.mxu0
    %v514 = vadd.f32 %v443, %v513
    %v515 = vpop.f32.mrf.mxu0
    %v516 = vadd.f32 %v445, %v515
    %517 = vdwg.mxu0
    %v518 = vadd.f32 %v105, %v514
    %v519 = vadd.f32 %v106, %v516
    %520 = vst [vmem:[#allocation2] sm:$0xff] %v518
    %521 = vst [vmem:[#allocation2 + $0x8] sm:$0xff] %v519
    // Predicated region
    $region62: #{tpu_custom_call.1} parent=1 // pred_check
      %p522 = pneg %p99
    $region63: #{tpu_custom_call.1} parent=1 // pred_check_branch
      %524 = sbr.rel (%p522) target = $region65
    $region64: #{tpu_custom_call.1} parent=1 // pred_region
      %v525 = vld [vmem:[#allocation2] sm:$0xff]
      %v526 = vld [vmem:[#allocation2 + $0x8] sm:$0xff]
      %v527 = vld [vmem:[%s2] sm:$0x3]
      %v529 = vlaneseq
      %v530 = vshrl.u32 %v529, 7
      %v531 = vsub.s32 0, %v530
      %v532 = vrot.slane %v527, %v531
      %v533 = vlaneseq
      %v534 = vshrl.u32 %v533, 7
      %v535 = vsub.s32 1, %v534
      %v536 = vrot.slane %v527, %v535
      %v539 = vadd.f32 %v525, %v532
      %v540 = vadd.f32 %v526, %v536
      %v541 = vmax.f32 %v539, 0.0
      %v542 = vmax.f32 %v540, 0.0
      %v543 = vld [vmem:[#allocation8] sm:$0xff]
      %v544 = vld [vmem:[#allocation8 + $0x8] sm:$0xff]
      %v545 = vld [vmem:[#allocation8 + $0x10] sm:$0xff]
      %v546 = vld [vmem:[#allocation8 + $0x18] sm:$0xff]
      %v547 = vld [vmem:[#allocation8 + $0x20] sm:$0xff]
      %v548 = vld [vmem:[#allocation8 + $0x28] sm:$0xff]
      %v549 = vld [vmem:[#allocation8 + $0x30] sm:$0xff]
      %v550 = vld [vmem:[#allocation8 + $0x38] sm:$0xff]
      %v551 = vld [vmem:[#allocation8 + $0x40] sm:$0xff]
      %v552 = vld [vmem:[#allocation8 + $0x48] sm:$0xff]
      %v553 = vld [vmem:[#allocation8 + $0x50] sm:$0xff]
      %v554 = vld [vmem:[#allocation8 + $0x58] sm:$0xff]
      %v555 = vld [vmem:[#allocation8 + $0x60] sm:$0xff]
      %v556 = vld [vmem:[#allocation8 + $0x68] sm:$0xff]
      %v557 = vld [vmem:[#allocation8 + $0x70] sm:$0xff]
      %v558 = vld [vmem:[#allocation8 + $0x78] sm:$0xff]
      %v559 = vld [vmem:[#allocation8 + $0x80] sm:$0xff]
      %v560 = vld [vmem:[#allocation8 + $0x88] sm:$0xff]
      %v561 = vld [vmem:[#allocation8 + $0x90] sm:$0xff]
      %v562 = vld [vmem:[#allocation8 + $0x98] sm:$0xff]
      %v563 = vld [vmem:[#allocation8 + $0xa0] sm:$0xff]
      %v564 = vld [vmem:[#allocation8 + $0xa8] sm:$0xff]
      %v565 = vld [vmem:[#allocation8 + $0xb0] sm:$0xff]
      %v566 = vld [vmem:[#allocation8 + $0xb8] sm:$0xff]
      %v567 = vld [vmem:[#allocation8 + $0xc0] sm:$0xff]
      %v568 = vld [vmem:[#allocation8 + $0xc8] sm:$0xff]
      %v569 = vld [vmem:[#allocation8 + $0xd0] sm:$0xff]
      %v570 = vld [vmem:[#allocation8 + $0xd8] sm:$0xff]
      %v571 = vld [vmem:[#allocation8 + $0xe0] sm:$0xff]
      %v572 = vld [vmem:[#allocation8 + $0xe8] sm:$0xff]
      %v573 = vld [vmem:[#allocation8 + $0xf0] sm:$0xff]
      %v574 = vld [vmem:[#allocation8 + $0xf8] sm:$0xff]
      %v575 = vld [vmem:[#allocation8 + $0x100] sm:$0xff]
      %v576 = vld [vmem:[#allocation8 + $0x108] sm:$0xff]
      %v577 = vld [vmem:[#allocation8 + $0x110] sm:$0xff]
      %v578 = vld [vmem:[#allocation8 + $0x118] sm:$0xff]
      %v579 = vld [vmem:[#allocation8 + $0x120] sm:$0xff]
      %v580 = vld [vmem:[#allocation8 + $0x128] sm:$0xff]
      %v581 = vld [vmem:[#allocation8 + $0x130] sm:$0xff]
      %v582 = vld [vmem:[#allocation8 + $0x138] sm:$0xff]
      %v583 = vld [vmem:[#allocation8 + $0x140] sm:$0xff]
      %v584 = vld [vmem:[#allocation8 + $0x148] sm:$0xff]
      %v585 = vld [vmem:[#allocation8 + $0x150] sm:$0xff]
      %v586 = vld [vmem:[#allocation8 + $0x158] sm:$0xff]
      %v587 = vld [vmem:[#allocation8 + $0x160] sm:$0xff]
      %v588 = vld [vmem:[#allocation8 + $0x168] sm:$0xff]
      %v589 = vld [vmem:[#allocation8 + $0x170] sm:$0xff]
      %v590 = vld [vmem:[#allocation8 + $0x178] sm:$0xff]
      %v591 = vld [vmem:[#allocation8 + $0x180] sm:$0xff]
      %v592 = vld [vmem:[#allocation8 + $0x188] sm:$0xff]
      %v593 = vld [vmem:[#allocation8 + $0x190] sm:$0xff]
      %v594 = vld [vmem:[#allocation8 + $0x198] sm:$0xff]
      %v595 = vld [vmem:[#allocation8 + $0x1a0] sm:$0xff]
      %v596 = vld [vmem:[#allocation8 + $0x1a8] sm:$0xff]
      %v597 = vld [vmem:[#allocation8 + $0x1b0] sm:$0xff]
      %v598 = vld [vmem:[#allocation8 + $0x1b8] sm:$0xff]
      %v599 = vld [vmem:[#allocation8 + $0x1c0] sm:$0xff]
      %v600 = vld [vmem:[#allocation8 + $0x1c8] sm:$0xff]
      %v601 = vld [vmem:[#allocation8 + $0x1d0] sm:$0xff]
      %v602 = vld [vmem:[#allocation8 + $0x1d8] sm:$0xff]
      %v603 = vld [vmem:[#allocation8 + $0x1e0] sm:$0xff]
      %v604 = vld [vmem:[#allocation8 + $0x1e8] sm:$0xff]
      %v605 = vld [vmem:[#allocation8 + $0x1f0] sm:$0xff]
      %v606 = vld [vmem:[#allocation8 + $0x1f8] sm:$0xff]
      %v607 = vld [vmem:[%s4] sm:$0x3]
      %v609 = vlaneseq
      %v610 = vshrl.u32 %v609, 7
      %v611 = vsub.s32 0, %v610
      %v612 = vrot.slane %v607, %v611
      %v613 = vlaneseq
      %v614 = vshrl.u32 %v613, 7
      %v615 = vsub.s32 1, %v614
      %v616 = vrot.slane %v607, %v615
      %619 = vmatprep.subr.mxu0 %v574
      %620 = vmatpush1.msra.mxu0 %v573
      %621 = vmatprep.subr.mxu0 %v572
      %622 = vmatpush1.msra.mxu0 %v571
      %623 = vmatprep.subr.mxu0 %v570
      %624 = vmatpush1.msra.mxu0 %v569
      %625 = vmatprep.subr.mxu0 %v568
      %626 = vmatpush1.msra.mxu0 %v567
      %627 = vmatprep.subr.mxu0 %v566
      %628 = vmatpush1.msra.mxu0 %v565
      %629 = vmatprep.subr.mxu0 %v564
      %630 = vmatpush1.msra.mxu0 %v563
      %631 = vmatprep.subr.mxu0 %v562
      %632 = vmatpush1.msra.mxu0 %v561
      %633 = vmatprep.subr.mxu0 %v560
      %634 = vmatpush1.msra.mxu0 %v559
      %635 = vmatprep.subr.mxu0 %v558
      %636 = vmatpush1.msra.mxu0 %v557
      %637 = vmatprep.subr.mxu0 %v556
      %638 = vmatpush1.msra.mxu0 %v555
      %639 = vmatprep.subr.mxu0 %v554
      %640 = vmatpush1.msra.mxu0 %v553
      %641 = vmatprep.subr.mxu0 %v552
      %642 = vmatpush1.msra.mxu0 %v551
      %643 = vmatprep.subr.mxu0 %v550
      %644 = vmatpush1.msra.mxu0 %v549
      %645 = vmatprep.subr.mxu0 %v548
      %646 = vmatpush1.msra.mxu0 %v547
      %647 = vmatprep.subr.mxu0 %v546
      %648 = vmatpush1.msra.mxu0 %v545
      %649 = vmatprep.subr.mxu0 %v544
      %650 = vmatpush1.msra.mxu0 %v543
      %651 = vmatprep.subr.mxu0 %v606
      %652 = vmatpush2.msra.mxu0 %v605
      %653 = vmatprep.subr.mxu0 %v604
      %654 = vmatpush2.msra.mxu0 %v603
      %655 = vmatprep.subr.mxu0 %v602
      %656 = vmatpush2.msra.mxu0 %v601
      %657 = vmatprep.subr.mxu0 %v600
      %658 = vmatpush2.msra.mxu0 %v599
      %659 = vmatprep.subr.mxu0 %v598
      %660 = vmatpush2.msra.mxu0 %v597
      %661 = vmatprep.subr.mxu0 %v596
      %662 = vmatpush2.msra.mxu0 %v595
      %663 = vmatprep.subr.mxu0 %v594
      %664 = vmatpush2.msra.mxu0 %v593
      %665 = vmatprep.subr.mxu0 %v592
      %666 = vmatpush2.msra.mxu0 %v591
      %667 = vmatprep.subr.mxu0 %v590
      %668 = vmatpush2.msra.mxu0 %v589
      %669 = vmatprep.subr.mxu0 %v588
      %670 = vmatpush2.msra.mxu0 %v587
      %671 = vmatprep.subr.mxu0 %v586
      %672 = vmatpush2.msra.mxu0 %v585
      %673 = vmatprep.subr.mxu0 %v584
      %674 = vmatpush2.msra.mxu0 %v583
      %675 = vmatprep.subr.mxu0 %v582
      %676 = vmatpush2.msra.mxu0 %v581
      %677 = vmatprep.subr.mxu0 %v580
      %678 = vmatpush2.msra.mxu0 %v579
      %679 = vmatprep.subr.mxu0 %v578
      %680 = vmatpush2.msra.mxu0 %v577
      %681 = vmatprep.subr.mxu0 %v576
      %682 = vmatpush2.msra.mxu0 %v575
      %683 = vmatprep.mubr.f32.mxu0 %v542
      %684 = vmatmul.mubr.f32.gmra.mxu0 %v541
      %v685 = vpop.f32.mrf.mxu0
      %v686 = vadd.f32 %v612, %v685
      %v687 = vpop.f32.mrf.mxu0
      %v688 = vadd.f32 %v616, %v687
      %689 = vdwg.mxu0
      %v690 = vmax.f32 %v686, 0.0
      %v691 = vmax.f32 %v688, 0.0
      %v692 = vld [vmem:[#allocation9] sm:$0xff]
      %v693 = vld [vmem:[#allocation9 + $0x8] sm:$0xff]
      %v694 = vld [vmem:[#allocation9 + $0x10] sm:$0xff]
      %v695 = vld [vmem:[#allocation9 + $0x18] sm:$0xff]
      %v696 = vld [vmem:[#allocation9 + $0x20] sm:$0xff]
      %v697 = vld [vmem:[#allocation9 + $0x28] sm:$0xff]
      %v698 = vld [vmem:[#allocation9 + $0x30] sm:$0xff]
      %v699 = vld [vmem:[#allocation9 + $0x38] sm:$0xff]
      %v700 = vld [vmem:[#allocation9 + $0x40] sm:$0xff]
      %v701 = vld [vmem:[#allocation9 + $0x48] sm:$0xff]
      %v702 = vld [vmem:[#allocation9 + $0x50] sm:$0xff]
      %v703 = vld [vmem:[#allocation9 + $0x58] sm:$0xff]
      %v704 = vld [vmem:[#allocation9 + $0x60] sm:$0xff]
      %v705 = vld [vmem:[#allocation9 + $0x68] sm:$0xff]
      %v706 = vld [vmem:[#allocation9 + $0x70] sm:$0xff]
      %v707 = vld [vmem:[#allocation9 + $0x78] sm:$0xff]
      %v708 = vld [vmem:[#allocation9 + $0x80] sm:$0xff]
      %v709 = vld [vmem:[#allocation9 + $0x88] sm:$0xff]
      %v710 = vld [vmem:[#allocation9 + $0x90] sm:$0xff]
      %v711 = vld [vmem:[#allocation9 + $0x98] sm:$0xff]
      %v712 = vld [vmem:[#allocation9 + $0xa0] sm:$0xff]
      %v713 = vld [vmem:[#allocation9 + $0xa8] sm:$0xff]
      %v714 = vld [vmem:[#allocation9 + $0xb0] sm:$0xff]
      %v715 = vld [vmem:[#allocation9 + $0xb8] sm:$0xff]
      %v716 = vld [vmem:[#allocation9 + $0xc0] sm:$0xff]
      %v717 = vld [vmem:[#allocation9 + $0xc8] sm:$0xff]
      %v718 = vld [vmem:[#allocation9 + $0xd0] sm:$0xff]
      %v719 = vld [vmem:[#allocation9 + $0xd8] sm:$0xff]
      %v720 = vld [vmem:[#allocation9 + $0xe0] sm:$0xff]
      %v721 = vld [vmem:[#allocation9 + $0xe8] sm:$0xff]
      %v722 = vld [vmem:[#allocation9 + $0xf0] sm:$0xff]
      %v723 = vld [vmem:[#allocation9 + $0xf8] sm:$0xff]
      %v724 = vld [vmem:[%s6] sm:$0x1]
      %v726 = vlaneseq
      %v727 = vshrl.u32 %v726, 7
      %v728 = vsub.s32 0, %v727
      %v729 = vrot.slane %v724, %v728
      %731 = vmatprep.subr.mxu0 0.0
      %732 = vmatpush1.msra.mxu0 %v707
      %733 = vmatprep.subr.mxu0 0.0
      %734 = vmatpush1.msra.mxu0 %v706
      %735 = vmatprep.subr.mxu0 0.0
      %736 = vmatpush1.msra.mxu0 %v705
      %737 = vmatprep.subr.mxu0 0.0
      %738 = vmatpush1.msra.mxu0 %v704
      %739 = vmatprep.subr.mxu0 0.0
      %740 = vmatpush1.msra.mxu0 %v703
      %741 = vmatprep.subr.mxu0 0.0
      %742 = vmatpush1.msra.mxu0 %v702
      %743 = vmatprep.subr.mxu0 0.0
      %744 = vmatpush1.msra.mxu0 %v701
      %745 = vmatprep.subr.mxu0 0.0
      %746 = vmatpush1.msra.mxu0 %v700
      %747 = vmatprep.subr.mxu0 0.0
      %748 = vmatpush1.msra.mxu0 %v699
      %749 = vmatprep.subr.mxu0 0.0
      %750 = vmatpush1.msra.mxu0 %v698
      %751 = vmatprep.subr.mxu0 0.0
      %752 = vmatpush1.msra.mxu0 %v697
      %753 = vmatprep.subr.mxu0 0.0
      %754 = vmatpush1.msra.mxu0 %v696
      %755 = vmatprep.subr.mxu0 0.0
      %756 = vmatpush1.msra.mxu0 %v695
      %757 = vmatprep.subr.mxu0 0.0
      %758 = vmatpush1.msra.mxu0 %v694
      %759 = vmatprep.subr.mxu0 0.0
      %760 = vmatpush1.msra.mxu0 %v693
      %761 = vmatprep.subr.mxu0 0.0
      %762 = vmatpush1.msra.mxu0 %v692
      %763 = vmatprep.subr.mxu0 0.0
      %764 = vmatpush2.msra.mxu0 %v723
      %765 = vmatprep.subr.mxu0 0.0
      %766 = vmatpush2.msra.mxu0 %v722
      %767 = vmatprep.subr.mxu0 0.0
      %768 = vmatpush2.msra.mxu0 %v721
      %769 = vmatprep.subr.mxu0 0.0
      %770 = vmatpush2.msra.mxu0 %v720
      %771 = vmatprep.subr.mxu0 0.0
      %772 = vmatpush2.msra.mxu0 %v719
      %773 = vmatprep.subr.mxu0 0.0
      %774 = vmatpush2.msra.mxu0 %v718
      %775 = vmatprep.subr.mxu0 0.0
      %776 = vmatpush2.msra.mxu0 %v717
      %777 = vmatprep.subr.mxu0 0.0
      %778 = vmatpush2.msra.mxu0 %v716
      %779 = vmatprep.subr.mxu0 0.0
      %780 = vmatpush2.msra.mxu0 %v715
      %781 = vmatprep.subr.mxu0 0.0
      %782 = vmatpush2.msra.mxu0 %v714
      %783 = vmatprep.subr.mxu0 0.0
      %784 = vmatpush2.msra.mxu0 %v713
      %785 = vmatprep.subr.mxu0 0.0
      %786 = vmatpush2.msra.mxu0 %v712
      %787 = vmatprep.subr.mxu0 0.0
      %788 = vmatpush2.msra.mxu0 %v711
      %789 = vmatprep.subr.mxu0 0.0
      %790 = vmatpush2.msra.mxu0 %v710
      %791 = vmatprep.subr.mxu0 0.0
      %792 = vmatpush2.msra.mxu0 %v709
      %793 = vmatprep.subr.mxu0 0.0
      %794 = vmatpush2.msra.mxu0 %v708
      %795 = vmatprep.mubr.f32.mxu0 %v691
      %796 = vmatmul.mubr.f32.gmra.mxu0 %v690
      %v797 = vpop.f32.mrf.mxu0
      %v798 = vadd.f32 %v729, %v797
      %v799 = vpop.f32.mrf.mxu0
      %800 = vdwg.mxu0
      %v801 = vmax.f32 %v798, 0.0
      %v802 = vld [vmem:[#allocation11] sm:$0xff]
      %v803 = vld [vmem:[#allocation11 + $0x8] sm:$0xff]
      %v804 = vld [vmem:[#allocation11 + $0x10] sm:$0xff]
      %v805 = vld [vmem:[#allocation11 + $0x18] sm:$0xff]
      %v806 = vld [vmem:[#allocation11 + $0x20] sm:$0xff]
      %v807 = vld [vmem:[#allocation11 + $0x28] sm:$0xff]
      %v808 = vld [vmem:[#allocation11 + $0x30] sm:$0xff]
      %v809 = vld [vmem:[#allocation11 + $0x38] sm:$0xff]
      %v810 = vld [vmem:[#allocation11 + $0x40] sm:$0xff]
      %v811 = vld [vmem:[#allocation11 + $0x48] sm:$0xff]
      %v812 = vld [vmem:[#allocation11 + $0x50] sm:$0xff]
      %v813 = vld [vmem:[#allocation11 + $0x58] sm:$0xff]
      %v814 = vld [vmem:[#allocation11 + $0x60] sm:$0xff]
      %v815 = vld [vmem:[#allocation11 + $0x68] sm:$0xff]
      %v816 = vld [vmem:[#allocation11 + $0x70] sm:$0xff]
      %v817 = vld [vmem:[#allocation11 + $0x78] sm:$0xff]
      %v818 = vld [vmem:[%s8] sm:$0x1]
      %v820 = vlaneseq
      %v821 = vshrl.u32 %v820, 7
      %v822 = vsub.s32 0, %v821
      %v823 = vrot.slane %v818, %v822
      %825 = vmatprep.subr.mxu0 0.0
      %826 = vmatpush1.msra.mxu0 %v817
      %827 = vmatprep.subr.mxu0 0.0
      %828 = vmatpush1.msra.mxu0 %v816
      %829 = vmatprep.subr.mxu0 0.0
      %830 = vmatpush1.msra.mxu0 %v815
      %831 = vmatprep.subr.mxu0 0.0
      %832 = vmatpush1.msra.mxu0 %v814
      %833 = vmatprep.subr.mxu0 0.0
      %834 = vmatpush1.msra.mxu0 %v813
      %835 = vmatprep.subr.mxu0 0.0
      %836 = vmatpush1.msra.mxu0 %v812
      %837 = vmatprep.subr.mxu0 0.0
      %838 = vmatpush1.msra.mxu0 %v811
      %839 = vmatprep.subr.mxu0 0.0
      %840 = vmatpush1.msra.mxu0 %v810
      %841 = vmatprep.subr.mxu0 0.0
      %842 = vmatpush1.msra.mxu0 %v809
      %843 = vmatprep.subr.mxu0 0.0
      %844 = vmatpush1.msra.mxu0 %v808
      %845 = vmatprep.subr.mxu0 0.0
      %846 = vmatpush1.msra.mxu0 %v807
      %847 = vmatprep.subr.mxu0 0.0
      %848 = vmatpush1.msra.mxu0 %v806
      %849 = vmatprep.subr.mxu0 0.0
      %850 = vmatpush1.msra.mxu0 %v805
      %851 = vmatprep.subr.mxu0 0.0
      %852 = vmatpush1.msra.mxu0 %v804
      %853 = vmatprep.subr.mxu0 0.0
      %854 = vmatpush1.msra.mxu0 %v803
      %855 = vmatprep.subr.mxu0 0.0
      %856 = vmatpush1.msra.mxu0 %v802
      %857 = vmatprep.subr.mxu0 0.0
      %858 = vmatpush2.msra.mxu0 0.0
      %859 = vmatprep.subr.mxu0 0.0
      %860 = vmatpush2.msra.mxu0 0.0
      %861 = vmatprep.subr.mxu0 0.0
      %862 = vmatpush2.msra.mxu0 0.0
      %863 = vmatprep.subr.mxu0 0.0
      %864 = vmatpush2.msra.mxu0 0.0
      %865 = vmatprep.subr.mxu0 0.0
      %866 = vmatpush2.msra.mxu0 0.0
      %867 = vmatprep.subr.mxu0 0.0
      %868 = vmatpush2.msra.mxu0 0.0
      %869 = vmatprep.subr.mxu0 0.0
      %870 = vmatpush2.msra.mxu0 0.0
      %871 = vmatprep.subr.mxu0 0.0
      %872 = vmatpush2.msra.mxu0 0.0
      %873 = vmatprep.subr.mxu0 0.0
      %874 = vmatpush2.msra.mxu0 0.0
      %875 = vmatprep.subr.mxu0 0.0
      %876 = vmatpush2.msra.mxu0 0.0
      %877 = vmatprep.subr.mxu0 0.0
      %878 = vmatpush2.msra.mxu0 0.0
      %879 = vmatprep.subr.mxu0 0.0
      %880 = vmatpush2.msra.mxu0 0.0
      %881 = vmatprep.subr.mxu0 0.0
      %882 = vmatpush2.msra.mxu0 0.0
      %883 = vmatprep.subr.mxu0 0.0
      %884 = vmatpush2.msra.mxu0 0.0
      %885 = vmatprep.subr.mxu0 0.0
      %886 = vmatpush2.msra.mxu0 0.0
      %887 = vmatprep.subr.mxu0 0.0
      %888 = vmatpush2.msra.mxu0 0.0
      %889 = vmatprep.mubr.f32.mxu0 0.0
      %890 = vmatmul.mubr.f32.gmra.mxu0 %v801
      %v891 = vpop.f32.mrf.mxu0
      %v892 = vadd.f32 %v823, %v891
      %v893 = vpop.f32.mrf.mxu0
      %894 = vdwg.mxu0
      %895 = vst [vmem:[#allocation12] sm:$0xff] %v892
    $region65: #{tpu_custom_call.1} parent=1 // pred_fallthru
      _
    // Predicated region
    $region66: #{tpu_custom_call.1} parent=1 // pred_check
      _
    $region67: #{tpu_custom_call.1} parent=1 // pred_check_branch
      %897 = sbr.rel (0) target = $region69
    $region68: #{tpu_custom_call.1} parent=1 // pred_region
      %s899 = ssub.s32 128, 128
      %900 = vsyncadd [#allocation5], %s899
      %s902 = sshll.u32 [#allocation12], 4
      %s903 = int_to_ptr.vmem [resolvable:$true] %s902
      %905 = dma.vmem_to_hbm [thread:$0]  %s903, 128, %s9, [#allocation5]
    $region69: #{tpu_custom_call.1} parent=1 // pred_fallthru
      _
    // Predicated region
    $region70: #{tpu_custom_call.1} parent=1 // pred_check
      _
    $region71: #{tpu_custom_call.1} parent=1 // pred_check_branch
      %907 = sbr.rel (0) target = $region73
    $region72: #{tpu_custom_call.1} parent=1 // pred_region
      %908 = dma.done [#allocation5], 128
    $region73: #{tpu_custom_call.1} parent=1 // pred_fallthru
      _
    %909 = vsyncpa [#allocation4], 1
    %910 = vsyncpa [#allocation7], 1
    %911 = vsyncpa [#allocation10], 1
    %912 = vsyncpa [#allocation5], 1

</llo_original>
